<compile_context>
chip_gen: v7x
topology: tpu7x:2x2x1
jax: 0.10.0
libtpu: 0.0.40
codegen_flags: <defaults>
</compile_context>

<pallas_src>
import functools

import jax
import jax.numpy as jnp
from jax.experimental import pallas as pl
from jax.experimental.pallas import tpu as pltpu


def write_unit_kernel(retrieved_ref, mem_t_ref, prev_mem_ref, ctrl_t_ref, c_last_ref,
                      w_concat_ref, b_concat_ref, w_attn_ref,
                      w_mem_ref, b_mem_ref, w_ctrl_ref, b_ctrl_ref,
                      out_ref,
                      cw_sc, m_sc, l_sc, acc_sc,
                      *, approx_recip):
    t = pl.program_id(0)
    T = pl.num_programs(0)
    D = out_ref.shape[-1]
    mxu_dtype = w_mem_ref.dtype          # bf16 in production, f32 for exact checks

    @pl.when(t == 0)
    def _init():
        # Fold c_last * w_attn once (constant across all T steps).
        cw_sc[...] = c_last_ref[0] * w_attn_ref[...]          # [B, D]
        m_sc[...] = jnp.full(m_sc.shape, -jnp.inf, m_sc.dtype)
        l_sc[...] = jnp.zeros(l_sc.shape, l_sc.dtype)
        acc_sc[...] = jnp.zeros(acc_sc.shape, acc_sc.dtype)

    # ---- online softmax over the step axis (one [B,D] block per grid step) ----
    # All live values are [B,1]/[B,D] with B on sublanes; elementwise math is f32.
    # b_attn is dropped: softmax is invariant to an additive constant.
    mem_t = mem_t_ref[0]                                       # [B, D]
    ctrl_t = ctrl_t_ref[0]                                     # [B, D]
    logit = jnp.sum(ctrl_t * cw_sc[...], axis=-1, keepdims=True)   # [B, 1]
    m_new = jnp.maximum(m_sc[...], logit)
    alpha = jnp.exp(m_sc[...] - m_new)
    p = jnp.exp(logit - m_new)
    l_sc[...] = alpha * l_sc[...] + p
    acc_sc[...] = alpha * acc_sc[...] + p * mem_t
    m_sc[...] = m_new

    @pl.when(t == T - 1)
    def _finalize():
        prev_mem = prev_mem_ref[0]                             # [B, D]
        retrieved = retrieved_ref[...]                         # [B, D]
        c_last = c_last_ref[0]                                 # [B, D]

        # concat = Linear(2D -> D)(cat([retrieved, prev_mem], 1)):
        # two MXU dots on static weight halves (no lane-axis concatenate),
        # bf16 operands with f32 accumulation.
        w_r = w_concat_ref[pl.ds(0, D), :]                     # [D, D]
        w_m = w_concat_ref[pl.ds(D, D), :]                     # [D, D]
        concat = (jnp.dot(retrieved.astype(mxu_dtype), w_r,
                          preferred_element_type=jnp.float32)
                  + jnp.dot(prev_mem.astype(mxu_dtype), w_m,
                            preferred_element_type=jnp.float32)
                  + b_concat_ref[...])                         # [B, D]

        # Normalize the online-softmax accumulator and apply the mem linear.
        attn_mem = acc_sc[...] * pl.reciprocal(l_sc[...], approx=approx_recip)
        next_mem = (jnp.dot(attn_mem.astype(mxu_dtype), w_mem_ref[...],
                            preferred_element_type=jnp.float32)
                    + b_mem_ref[...] + concat)                 # [B, D]

        # ---- memory gate ----
        gate = jax.nn.sigmoid(
            jnp.sum(c_last * w_ctrl_ref[...], axis=-1, keepdims=True)
            + b_ctrl_ref[...])                                 # [B, 1]
        out_ref[...] = gate * prev_mem + (1.0 - gate) * next_mem


def write_unit(memories, controls, retrieved, params, *,
               matmul_dtype=jnp.bfloat16, approx_recip=True):
    """memories: [T, B, D], controls: [T+1, B, D], retrieved: [B, D] (all f32)."""
    T, B, D = memories.shape
    assert controls.shape == (T + 1, B, D)

    # Matmul weights in MXU dtype (production: store these in bf16 to begin with,
    # halving resident VMEM + HBM weight stream). Elementwise weights stay f32.
    w_concat = params["w_concat"].astype(matmul_dtype)
    w_mem = params["w_mem"].astype(matmul_dtype)

    const2 = lambda shape: pl.BlockSpec(shape, lambda t: (0, 0))   # VMEM-resident

    in_specs = [
        const2((B, D)),                                       # retrieved
        pl.BlockSpec((1, B, D), lambda t: (t, 0, 0)),         # memories[t] (streamed)
        pl.BlockSpec((1, B, D), lambda t: (T - 1, 0, 0)),     # prev_mem (resident)
        pl.BlockSpec((1, B, D), lambda t: (t, 0, 0)),         # controls[t] (streamed)
        pl.BlockSpec((1, B, D), lambda t: (T, 0, 0)),         # c_last (resident)
        const2((2 * D, D)),                                   # w_concat (resident)
        const2((1, D)),                                       # b_concat
        const2((1, D)),                                       # w_attn
        const2((D, D)),                                       # w_mem (resident)
        const2((1, D)),                                       # b_mem
        const2((1, D)),                                       # w_ctrl
        const2((1, 1)),                                       # b_ctrl
    ]
    out_spec = pl.BlockSpec((B, D), lambda t: (0, 0))

    scratch_shapes = [
        pltpu.VMEM((B, D), jnp.float32),   # cw   = c_last * w_attn
        pltpu.VMEM((B, 1), jnp.float32),   # m    (online-softmax running max)
        pltpu.VMEM((B, 1), jnp.float32),   # l    (running sum of exp)
        pltpu.VMEM((B, D), jnp.float32),   # acc  (running weighted memory sum)
    ]

    # --- explicit VMEM budget + cost estimate (scheduling hygiene) ---
    w_bytes = jnp.dtype(matmul_dtype).itemsize
    blk_f32 = B * D * 4
    weight_bytes = 3 * D * D * w_bytes + (4 * D + 1) * 4
    # x2 for default double-buffering of BlockSpec'd inputs/outputs.
    vmem_need = 2 * (weight_bytes + 6 * blk_f32) + (2 * blk_f32 + 2 * B * 4)
    vmem_limit = int(vmem_need) + (8 << 20)    # headroom for compiler scratch

    flops = (2 * B * (2 * D) * D + 2 * B * D * D          # concat + mem linears
             + T * (4 * B * D + 8 * B)                    # logits + online softmax
             + 8 * B * D)                                  # gate blend / normalize
    transcendentals = 2 * T * B + 2 * B                    # exp, sigmoid, reciprocal
    bytes_accessed = ((T + (T + 1) + 2) * B * D * 4        # memories, controls, retrieved, out
                      + weight_bytes)

    kernel = functools.partial(write_unit_kernel, approx_recip=approx_recip)

    return pl.pallas_call(
        kernel,
        out_shape=jax.ShapeDtypeStruct((B, D), jnp.float32),
        grid_spec=pltpu.PrefetchScalarGridSpec(
            num_scalar_prefetch=0,
            grid=(T,),
            in_specs=in_specs,
            out_specs=out_spec,
            scratch_shapes=scratch_shapes),
        compiler_params=pltpu.CompilerParams(
            dimension_semantics=("arbitrary",),     # sequential reduction over steps
            vmem_limit_bytes=vmem_limit),
        cost_estimate=pl.CostEstimate(
            flops=int(flops),
            transcendentals=int(transcendentals),
            bytes_accessed=int(bytes_accessed)),
    )(retrieved, memories, memories, controls, controls,
      w_concat, params["b_concat"], params["w_attn"],
      w_mem, params["b_mem"], params["w_ctrl"], params["b_ctrl"])


def reference(memories, controls, retrieved, p):
    """Pure-JAX reference matching the PyTorch forward semantics (f32 throughout)."""
    prev_mem = memories[-1]
    concat = jnp.concatenate([retrieved, prev_mem], 1) @ p["w_concat"] + p["b_concat"]
    controls_prev = controls[:-1]
    c_last = controls[-1]
    inter = c_last[None] * controls_prev                                      # [T, B, D]
    logits = jnp.sum(inter * p["w_attn"][None], axis=-1) + p["b_attn"][0, 0]  # [T, B]
    attn = jax.nn.softmax(logits, axis=0)
    attn_mem = jnp.sum(attn[:, :, None] * memories, axis=0)
    next_mem = attn_mem @ p["w_mem"] + p["b_mem"] + concat
    gate = jax.nn.sigmoid(jnp.sum(c_last * p["w_ctrl"], axis=-1, keepdims=True)
                          + p["b_ctrl"][0, 0])
    return gate * prev_mem + (1.0 - gate) * next_mem


def make_params(key, D):
    """Deterministic xavier_uniform init matching the torch module's shapes.
       Weights stored as [in_dim, out_dim]; biases zero (as in linear())."""
    def xavier(k, fan_in, fan_out, shape):
        bound = (6.0 / (fan_in + fan_out)) ** 0.5
        return jax.random.uniform(k, shape, jnp.float32, -bound, bound)

    k1, k2, k3, k4 = jax.random.split(key, 4)
    return {
        "w_concat": xavier(k1, 2 * D, D, (2 * D, D)),   # self.concat: Linear(2D, D)
        "b_concat": jnp.zeros((1, D), jnp.float32),
        "w_attn": xavier(k2, D, 1, (1, D)),             # self.attn: Linear(D, 1)
        "b_attn": jnp.zeros((1, 1), jnp.float32),       # cancelled by softmax; not passed to kernel
        "w_mem": xavier(k3, D, D, (D, D)),              # self.mem: Linear(D, D)
        "b_mem": jnp.zeros((1, D), jnp.float32),
        "w_ctrl": xavier(k4, D, 1, (1, D)),             # self.control: Linear(D, 1)
        "b_ctrl": jnp.zeros((1, 1), jnp.float32),
    }


if __name__ == "__main__":
    # TPU-tile-friendly small shapes: B=8 fills the sublanes, D=128 is lane-dense
    # (unmasked vst), T=4 reasoning steps.
    B, D, T = 8, 128, 4

    key = jax.random.PRNGKey(0)
    k_mem, k_ctrl, k_ret, k_par = jax.random.split(key, 4)

    memories = jax.random.normal(k_mem, (T, B, D), jnp.float32)       # len(memories) == T
    controls = jax.random.normal(k_ctrl, (T + 1, B, D), jnp.float32)  # len(controls) == T + 1
    retrieved = jax.random.normal(k_ret, (B, D), jnp.float32)
    params = make_params(k_par, D)

    ref = reference(memories, controls, retrieved, params)

    # 1) exact-numerics variant (f32 MXU operands, exact reciprocal): tight check.
    out_f32 = write_unit(memories, controls, retrieved, params,
                         matmul_dtype=jnp.float32, approx_recip=False)
    out_f32 = jax.block_until_ready(out_f32)
    assert out_f32.shape == (B, D)
    assert jnp.allclose(out_f32, ref, atol=1e-4, rtol=1e-4), "f32 kernel mismatch vs reference"

    # 2) production variant (bf16 MXU operands + approx reciprocal): loosened tolerance.
    out_bf16 = write_unit(memories, controls, retrieved, params)
    out_bf16 = jax.block_until_ready(out_bf16)
    assert out_bf16.shape == (B, D)
    assert jnp.allclose(out_bf16, ref, atol=3e-2, rtol=3e-2), "bf16 kernel mismatch vs reference"

    print("KERNEL_OK")
</pallas_src>

<mosaic_0001>
module attributes {stable_mosaic.version = 11 : i64} {
  func.func @write_unit_kernel(%arg0: i32, %arg1: memref<8x128xf32, #tpu.memory_space<vmem>>, %arg2: memref<1x8x128xf32, #tpu.memory_space<vmem>>, %arg3: memref<1x8x128xf32, #tpu.memory_space<vmem>>, %arg4: memref<1x8x128xf32, #tpu.memory_space<vmem>>, %arg5: memref<1x8x128xf32, #tpu.memory_space<vmem>>, %arg6: memref<256x128xf32, #tpu.memory_space<vmem>>, %arg7: memref<1x128xf32, #tpu.memory_space<vmem>>, %arg8: memref<1x128xf32, #tpu.memory_space<vmem>>, %arg9: memref<128x128xf32, #tpu.memory_space<vmem>>, %arg10: memref<1x128xf32, #tpu.memory_space<vmem>>, %arg11: memref<1x128xf32, #tpu.memory_space<vmem>>, %arg12: memref<1x1xf32, #tpu.memory_space<vmem>>, %arg13: memref<8x128xf32, #tpu.memory_space<vmem>>, %arg14: memref<8x128xf32, #tpu.memory_space<vmem>>, %arg15: memref<8x1xf32, #tpu.memory_space<vmem>>, %arg16: memref<8x1xf32, #tpu.memory_space<vmem>>, %arg17: memref<8x128xf32, #tpu.memory_space<vmem>>) attributes {dimension_semantics = [#tpu.dimension_semantics<arbitrary>], iteration_bounds = array<i64: 4>, scalar_prefetch = 0 : i64, scratch_operands = 4 : i64, tpu.core_type = #tpu.core_type<tc>, window_params = [{pipeline_mode = #tpu.pipeline_mode<synchronous>, transform_indices = @transform_0, window_bounds = array<i64: 8, 128>}, {transform_indices = @transform_1, window_bounds = array<i64: 1, 8, 128>}, {transform_indices = @transform_2, window_bounds = array<i64: 1, 8, 128>}, {transform_indices = @transform_3, window_bounds = array<i64: 1, 8, 128>}, {transform_indices = @transform_4, window_bounds = array<i64: 1, 8, 128>}, {pipeline_mode = #tpu.pipeline_mode<synchronous>, transform_indices = @transform_5, window_bounds = array<i64: 256, 128>}, {pipeline_mode = #tpu.pipeline_mode<synchronous>, transform_indices = @transform_6, window_bounds = array<i64: 1, 128>}, {pipeline_mode = #tpu.pipeline_mode<synchronous>, transform_indices = @transform_7, window_bounds = array<i64: 1, 128>}, {pipeline_mode = #tpu.pipeline_mode<synchronous>, transform_indices = @transform_8, window_bounds = array<i64: 128, 128>}, {pipeline_mode = #tpu.pipeline_mode<synchronous>, transform_indices = @transform_9, window_bounds = array<i64: 1, 128>}, {pipeline_mode = #tpu.pipeline_mode<synchronous>, transform_indices = @transform_10, window_bounds = array<i64: 1, 128>}, {pipeline_mode = #tpu.pipeline_mode<synchronous>, transform_indices = @transform_11, window_bounds = array<i64: 1, 1>}, {pipeline_mode = #tpu.pipeline_mode<synchronous>, transform_indices = @transform_12, window_bounds = array<i64: 8, 128>}]} {
    %c0_i32 = arith.constant 0 : i32
    %0 = arith.cmpi eq, %arg0, %c0_i32 : i32
    %1 = arith.extui %0 : i1 to i32
    %c0_i32_0 = arith.constant 0 : i32
    %2 = arith.cmpi ne, %1, %c0_i32_0 : i32
    scf.if %2 {
      %c0_23 = arith.constant 0 : index
      %c0_24 = arith.constant 0 : index
      %c0_25 = arith.constant 0 : index
      %33 = vector.load %arg5[%c0_23, %c0_24, %c0_25] : memref<1x8x128xf32, #tpu.memory_space<vmem>>, vector<1x8x128xf32>
      %34 = vector.shape_cast %33 : vector<1x8x128xf32> to vector<8x128xf32>
      %c0_26 = arith.constant 0 : index
      %c0_27 = arith.constant 0 : index
      %35 = vector.load %arg8[%c0_26, %c0_27] : memref<1x128xf32, #tpu.memory_space<vmem>>, vector<1x128xf32>
      %36 = vector.broadcast %35 : vector<1x128xf32> to vector<8x128xf32>
      %37 = arith.mulf %34, %36 : vector<8x128xf32>
      %c0_28 = arith.constant 0 : index
      %c0_29 = arith.constant 0 : index
      %38 = vector.load %arg14[%c0_28, %c0_29] : memref<8x128xf32, #tpu.memory_space<vmem>>, vector<8x128xf32>
      tpu.vector_store %arg14[%c0_28, %c0_29], %37 {strides = array<i32>} : memref<8x128xf32, #tpu.memory_space<vmem>>, vector<8x128xf32>,
      %cst_30 = arith.constant 0xFF800000 : f32
      %39 = vector.broadcast %cst_30 : f32 to vector<8x1xf32>
      %c0_31 = arith.constant 0 : index
      %c0_32 = arith.constant 0 : index
      %40 = vector.load %arg15[%c0_31, %c0_32] : memref<8x1xf32, #tpu.memory_space<vmem>>, vector<8x1xf32>
      tpu.vector_store %arg15[%c0_31, %c0_32], %39 {strides = array<i32>} : memref<8x1xf32, #tpu.memory_space<vmem>>, vector<8x1xf32>,
      %cst_33 = arith.constant 0.000000e+00 : f32
      %41 = vector.broadcast %cst_33 : f32 to vector<8x1xf32>
      %c0_34 = arith.constant 0 : index
      %c0_35 = arith.constant 0 : index
      %42 = vector.load %arg16[%c0_34, %c0_35] : memref<8x1xf32, #tpu.memory_space<vmem>>, vector<8x1xf32>
      tpu.vector_store %arg16[%c0_34, %c0_35], %41 {strides = array<i32>} : memref<8x1xf32, #tpu.memory_space<vmem>>, vector<8x1xf32>,
      %cst_36 = arith.constant 0.000000e+00 : f32
      %43 = vector.broadcast %cst_36 : f32 to vector<8x128xf32>
      %c0_37 = arith.constant 0 : index
      %c0_38 = arith.constant 0 : index
      %44 = vector.load %arg17[%c0_37, %c0_38] : memref<8x128xf32, #tpu.memory_space<vmem>>, vector<8x128xf32>
      tpu.vector_store %arg17[%c0_37, %c0_38], %43 {strides = array<i32>} : memref<8x128xf32, #tpu.memory_space<vmem>>, vector<8x128xf32>,
    } else {
    }
    %c0 = arith.constant 0 : index
    %c0_1 = arith.constant 0 : index
    %c0_2 = arith.constant 0 : index
    %3 = vector.load %arg2[%c0, %c0_1, %c0_2] : memref<1x8x128xf32, #tpu.memory_space<vmem>>, vector<1x8x128xf32>
    %4 = vector.shape_cast %3 : vector<1x8x128xf32> to vector<8x128xf32>
    %c0_3 = arith.constant 0 : index
    %c0_4 = arith.constant 0 : index
    %c0_5 = arith.constant 0 : index
    %5 = vector.load %arg4[%c0_3, %c0_4, %c0_5] : memref<1x8x128xf32, #tpu.memory_space<vmem>>, vector<1x8x128xf32>
    %6 = vector.shape_cast %5 : vector<1x8x128xf32> to vector<8x128xf32>
    %c0_6 = arith.constant 0 : index
    %c0_7 = arith.constant 0 : index
    %7 = vector.load %arg14[%c0_6, %c0_7] : memref<8x128xf32, #tpu.memory_space<vmem>>, vector<8x128xf32>
    %8 = arith.mulf %6, %7 : vector<8x128xf32>
    %cst = arith.constant dense<0.000000e+00> : vector<8xf32>
    %9 = vector.multi_reduction <add>, %8, %cst [1] : vector<8x128xf32> to vector<8xf32>
    %10 = vector.shape_cast %9 : vector<8xf32> to vector<8x1xf32>
    %c0_8 = arith.constant 0 : index
    %c0_9 = arith.constant 0 : index
    %11 = vector.load %arg15[%c0_8, %c0_9] : memref<8x1xf32, #tpu.memory_space<vmem>>, vector<8x1xf32>
    %12 = arith.maximumf %11, %10 : vector<8x1xf32>
    %c0_10 = arith.constant 0 : index
    %c0_11 = arith.constant 0 : index
    %13 = vector.load %arg15[%c0_10, %c0_11] : memref<8x1xf32, #tpu.memory_space<vmem>>, vector<8x1xf32>
    %14 = arith.subf %13, %12 : vector<8x1xf32>
    %15 = math.exp %14 : vector<8x1xf32>
    %16 = arith.subf %10, %12 : vector<8x1xf32>
    %17 = math.exp %16 : vector<8x1xf32>
    %c0_12 = arith.constant 0 : index
    %c0_13 = arith.constant 0 : index
    %18 = vector.load %arg16[%c0_12, %c0_13] : memref<8x1xf32, #tpu.memory_space<vmem>>, vector<8x1xf32>
    %19 = arith.mulf %15, %18 : vector<8x1xf32>
    %20 = arith.addf %19, %17 : vector<8x1xf32>
    %c0_14 = arith.constant 0 : index
    %c0_15 = arith.constant 0 : index
    %21 = vector.load %arg16[%c0_14, %c0_15] : memref<8x1xf32, #tpu.memory_space<vmem>>, vector<8x1xf32>
    tpu.vector_store %arg16[%c0_14, %c0_15], %20 {strides = array<i32>} : memref<8x1xf32, #tpu.memory_space<vmem>>, vector<8x1xf32>,
    %c0_16 = arith.constant 0 : index
    %c0_17 = arith.constant 0 : index
    %22 = vector.load %arg17[%c0_16, %c0_17] : memref<8x128xf32, #tpu.memory_space<vmem>>, vector<8x128xf32>
    %23 = vector.broadcast %15 : vector<8x1xf32> to vector<8x128xf32>
    %24 = arith.mulf %23, %22 : vector<8x128xf32>
    %25 = vector.broadcast %17 : vector<8x1xf32> to vector<8x128xf32>
    %26 = arith.mulf %25, %4 : vector<8x128xf32>
    %27 = arith.addf %24, %26 : vector<8x128xf32>
    %c0_18 = arith.constant 0 : index
    %c0_19 = arith.constant 0 : index
    %28 = vector.load %arg17[%c0_18, %c0_19] : memref<8x128xf32, #tpu.memory_space<vmem>>, vector<8x128xf32>
    tpu.vector_store %arg17[%c0_18, %c0_19], %27 {strides = array<i32>} : memref<8x128xf32, #tpu.memory_space<vmem>>, vector<8x128xf32>,
    %c0_20 = arith.constant 0 : index
    %c0_21 = arith.constant 0 : index
    %29 = vector.load %arg15[%c0_20, %c0_21] : memref<8x1xf32, #tpu.memory_space<vmem>>, vector<8x1xf32>
    tpu.vector_store %arg15[%c0_20, %c0_21], %12 {strides = array<i32>} : memref<8x1xf32, #tpu.memory_space<vmem>>, vector<8x1xf32>,
    %c3_i32 = arith.constant 3 : i32
    %30 = arith.cmpi eq, %arg0, %c3_i32 : i32
    %31 = arith.extui %30 : i1 to i32
    %c0_i32_22 = arith.constant 0 : i32
    %32 = arith.cmpi ne, %31, %c0_i32_22 : i32
    scf.if %32 {
      %c0_23 = arith.constant 0 : index
      %c0_24 = arith.constant 0 : index
      %c0_25 = arith.constant 0 : index
      %33 = vector.load %arg3[%c0_23, %c0_24, %c0_25] : memref<1x8x128xf32, #tpu.memory_space<vmem>>, vector<1x8x128xf32>
      %34 = vector.shape_cast %33 : vector<1x8x128xf32> to vector<8x128xf32>
      %c0_26 = arith.constant 0 : index
      %c0_27 = arith.constant 0 : index
      %35 = vector.load %arg1[%c0_26, %c0_27] : memref<8x128xf32, #tpu.memory_space<vmem>>, vector<8x128xf32>
      %c0_28 = arith.constant 0 : index
      %c0_29 = arith.constant 0 : index
      %c0_30 = arith.constant 0 : index
      %36 = vector.load %arg5[%c0_28, %c0_29, %c0_30] : memref<1x8x128xf32, #tpu.memory_space<vmem>>, vector<1x8x128xf32>
      %37 = vector.shape_cast %36 : vector<1x8x128xf32> to vector<8x128xf32>
      %c0_31 = arith.constant 0 : index
      %c0_32 = arith.constant 0 : index
      %38 = vector.load %arg6[%c0_31, %c0_32] : memref<256x128xf32, #tpu.memory_space<vmem>>, vector<128x128xf32>
      %c128 = arith.constant 128 : index
      %c0_33 = arith.constant 0 : index
      %39 = vector.load %arg6[%c128, %c0_33] : memref<256x128xf32, #tpu.memory_space<vmem>>, vector<128x128xf32>
      %cst_34 = arith.constant dense<0.000000e+00> : vector<8x128xf32>
      %40 = tpu.matmul %35, %38, %cst_34 {dimension_numbers = #tpu.dot_dimension_numbers<[1], [0], [0], [1], [0, 0, 1, 1], [], []>} : vector<8x128xf32>, vector<128x128xf32>, vector<8x128xf32> -> vector<8x128xf32>
      %cst_35 = arith.constant dense<0.000000e+00> : vector<8x128xf32>
      %41 = tpu.matmul %34, %39, %cst_35 {dimension_numbers = #tpu.dot_dimension_numbers<[1], [0], [0], [1], [0, 0, 1, 1], [], []>} : vector<8x128xf32>, vector<128x128xf32>, vector<8x128xf32> -> vector<8x128xf32>
      %42 = arith.addf %40, %41 : vector<8x128xf32>
      %c0_36 = arith.constant 0 : index
      %c0_37 = arith.constant 0 : index
      %43 = vector.load %arg7[%c0_36, %c0_37] : memref<1x128xf32, #tpu.memory_space<vmem>>, vector<1x128xf32>
      %44 = vector.broadcast %43 : vector<1x128xf32> to vector<8x128xf32>
      %45 = arith.addf %42, %44 : vector<8x128xf32>
      %c0_38 = arith.constant 0 : index
      %c0_39 = arith.constant 0 : index
      %46 = vector.load %arg17[%c0_38, %c0_39] : memref<8x128xf32, #tpu.memory_space<vmem>>, vector<8x128xf32>
      %c0_40 = arith.constant 0 : index
      %c0_41 = arith.constant 0 : index
      %47 = vector.load %arg16[%c0_40, %c0_41] : memref<8x1xf32, #tpu.memory_space<vmem>>, vector<8x1xf32>
      %48 = tpu.reciprocal %47 : vector<8x1xf32> -> vector<8x1xf32>
      %49 = vector.broadcast %48 : vector<8x1xf32> to vector<8x128xf32>
      %50 = arith.mulf %46, %49 : vector<8x128xf32>
      %c0_42 = arith.constant 0 : index
      %c0_43 = arith.constant 0 : index
      %51 = vector.load %arg9[%c0_42, %c0_43] : memref<128x128xf32, #tpu.memory_space<vmem>>, vector<128x128xf32>
      %cst_44 = arith.constant dense<0.000000e+00> : vector<8x128xf32>
      %52 = tpu.matmul %50, %51, %cst_44 {dimension_numbers = #tpu.dot_dimension_numbers<[1], [0], [0], [1], [0, 0, 1, 1], [], []>} : vector<8x128xf32>, vector<128x128xf32>, vector<8x128xf32> -> vector<8x128xf32>
      %c0_45 = arith.constant 0 : index
      %c0_46 = arith.constant 0 : index
      %53 = vector.load %arg10[%c0_45, %c0_46] : memref<1x128xf32, #tpu.memory_space<vmem>>, vector<1x128xf32>
      %54 = vector.broadcast %53 : vector<1x128xf32> to vector<8x128xf32>
      %55 = arith.addf %52, %54 : vector<8x128xf32>
      %56 = arith.addf %55, %45 : vector<8x128xf32>
      %c0_47 = arith.constant 0 : index
      %c0_48 = arith.constant 0 : index
      %57 = vector.load %arg11[%c0_47, %c0_48] : memref<1x128xf32, #tpu.memory_space<vmem>>, vector<1x128xf32>
      %58 = vector.broadcast %57 : vector<1x128xf32> to vector<8x128xf32>
      %59 = arith.mulf %37, %58 : vector<8x128xf32>
      %cst_49 = arith.constant dense<0.000000e+00> : vector<8xf32>
      %60 = vector.multi_reduction <add>, %59, %cst_49 [1] : vector<8x128xf32> to vector<8xf32>
      %61 = vector.shape_cast %60 : vector<8xf32> to vector<8x1xf32>
      %c0_50 = arith.constant 0 : index
      %c0_51 = arith.constant 0 : index
      %62 = vector.load %arg12[%c0_50, %c0_51] : memref<1x1xf32, #tpu.memory_space<vmem>>, vector<1x1xf32>
      %63 = vector.broadcast %62 : vector<1x1xf32> to vector<8x1xf32>
      %64 = arith.addf %61, %63 : vector<8x1xf32>
      %65 = arith.negf %64 : vector<8x1xf32>
      %66 = math.exp %65 : vector<8x1xf32>
      %cst_52 = arith.constant 1.000000e+00 : f32
      %67 = vector.broadcast %cst_52 : f32 to vector<8x1xf32>
      %68 = arith.addf %67, %66 : vector<8x1xf32>
      %69 = arith.divf %67, %68 : vector<8x1xf32>
      %70 = vector.broadcast %69 : vector<8x1xf32> to vector<8x128xf32>
      %71 = arith.mulf %70, %34 : vector<8x128xf32>
      %cst_53 = arith.constant 1.000000e+00 : f32
      %72 = vector.broadcast %cst_53 : f32 to vector<8x1xf32>
      %73 = arith.subf %72, %69 : vector<8x1xf32>
      %74 = vector.broadcast %73 : vector<8x1xf32> to vector<8x128xf32>
      %75 = arith.mulf %74, %56 : vector<8x128xf32>
      %76 = arith.addf %71, %75 : vector<8x128xf32>
      %c0_54 = arith.constant 0 : index
      %c0_55 = arith.constant 0 : index
      %77 = vector.load %arg13[%c0_54, %c0_55] : memref<8x128xf32, #tpu.memory_space<vmem>>, vector<8x128xf32>
      tpu.vector_store %arg13[%c0_54, %c0_55], %76 {strides = array<i32>} : memref<8x128xf32, #tpu.memory_space<vmem>>, vector<8x128xf32>,
    } else {
    }
    return
  }
  func.func @transform_0(%arg0: i32) -> (i32, i32) {
    %c0_i32 = arith.constant 0 : i32
    %c0_i32_0 = arith.constant 0 : i32
    %c0_i32_1 = arith.constant 0 : i32
    return %c0_i32, %c0_i32_0 : i32, i32
  }
  func.func @transform_1(%arg0: i32) -> (i32, i32, i32) {
    %c0_i32 = arith.constant 0 : i32
    %c0_i32_0 = arith.constant 0 : i32
    %c0_i32_1 = arith.constant 0 : i32
    return %arg0, %c0_i32, %c0_i32_0 : i32, i32, i32
  }
  func.func @transform_2(%arg0: i32) -> (i32, i32, i32) {
    %c3_i32 = arith.constant 3 : i32
    %c0_i32 = arith.constant 0 : i32
    %c0_i32_0 = arith.constant 0 : i32
    %c0_i32_1 = arith.constant 0 : i32
    return %c3_i32, %c0_i32, %c0_i32_0 : i32, i32, i32
  }
  func.func @transform_3(%arg0: i32) -> (i32, i32, i32) {
    %c0_i32 = arith.constant 0 : i32
    %c0_i32_0 = arith.constant 0 : i32
    %c0_i32_1 = arith.constant 0 : i32
    return %arg0, %c0_i32, %c0_i32_0 : i32, i32, i32
  }
  func.func @transform_4(%arg0: i32) -> (i32, i32, i32) {
    %c4_i32 = arith.constant 4 : i32
    %c0_i32 = arith.constant 0 : i32
    %c0_i32_0 = arith.constant 0 : i32
    %c0_i32_1 = arith.constant 0 : i32
    return %c4_i32, %c0_i32, %c0_i32_0 : i32, i32, i32
  }
  func.func @transform_5(%arg0: i32) -> (i32, i32) {
    %c0_i32 = arith.constant 0 : i32
    %c0_i32_0 = arith.constant 0 : i32
    %c0_i32_1 = arith.constant 0 : i32
    return %c0_i32, %c0_i32_0 : i32, i32
  }
  func.func @transform_6(%arg0: i32) -> (i32, i32) {
    %c0_i32 = arith.constant 0 : i32
    %c0_i32_0 = arith.constant 0 : i32
    %c0_i32_1 = arith.constant 0 : i32
    return %c0_i32, %c0_i32_0 : i32, i32
  }
  func.func @transform_7(%arg0: i32) -> (i32, i32) {
    %c0_i32 = arith.constant 0 : i32
    %c0_i32_0 = arith.constant 0 : i32
    %c0_i32_1 = arith.constant 0 : i32
    return %c0_i32, %c0_i32_0 : i32, i32
  }
  func.func @transform_8(%arg0: i32) -> (i32, i32) {
    %c0_i32 = arith.constant 0 : i32
    %c0_i32_0 = arith.constant 0 : i32
    %c0_i32_1 = arith.constant 0 : i32
    return %c0_i32, %c0_i32_0 : i32, i32
  }
  func.func @transform_9(%arg0: i32) -> (i32, i32) {
    %c0_i32 = arith.constant 0 : i32
    %c0_i32_0 = arith.constant 0 : i32
    %c0_i32_1 = arith.constant 0 : i32
    return %c0_i32, %c0_i32_0 : i32, i32
  }
  func.func @transform_10(%arg0: i32) -> (i32, i32) {
    %c0_i32 = arith.constant 0 : i32
    %c0_i32_0 = arith.constant 0 : i32
    %c0_i32_1 = arith.constant 0 : i32
    return %c0_i32, %c0_i32_0 : i32, i32
  }
  func.func @transform_11(%arg0: i32) -> (i32, i32) {
    %c0_i32 = arith.constant 0 : i32
    %c0_i32_0 = arith.constant 0 : i32
    %c0_i32_1 = arith.constant 0 : i32
    return %c0_i32, %c0_i32_0 : i32, i32
  }
  func.func @transform_12(%arg0: i32) -> (i32, i32) {
    %c0_i32 = arith.constant 0 : i32
    %c0_i32_0 = arith.constant 0 : i32
    %c0_i32_1 = arith.constant 0 : i32
    return %c0_i32, %c0_i32_0 : i32, i32
  }
}

</mosaic_0001>

<llo_original>
// kernel: tpu_custom_call.1
$region0: #{tpu_custom_call.1}
  #allocation0 [shape = 'u32[]', space=smem, size = 0x4, offset = 0x4, fixed_abs, tag = 'smem constant byte address 0x4 - core index']
  #allocation1 [shape = 'u32[144,128]{1,0:T(1,128)}', space=vmem, size = 0x12000, scoped, tag = 'internal scratch']
  #allocation2 [shape = 'f32[8,128]{1,0:T(8,128)}', space=vmem, size = 0x1000, scoped, tag = 'scratch operand']
  #allocation3 [shape = 'f32[8,1]{1,0:T(8,128)}', space=vmem, size = 0x1000, scoped, tag = 'scratch operand']
  #allocation4 [shape = 'f32[8,1]{1,0:T(8,128)}', space=vmem, size = 0x1000, scoped, tag = 'scratch operand']
  #allocation5 [shape = 'f32[8,128]{1,0:T(8,128)}', space=vmem, size = 0x1000, scoped, tag = 'scratch operand']
  #allocation6 [shape = 'f32[1,1]{1,0:T(1,128)S(1)}', space=vmem, size = 0x200, scoped, tag = 'scoped memory for tpu_custom_call.1']
  %s0 = inlined_call_operand.hbm [shape: f32[8,128], index: 0, kind: input, shape index: {}]
  %s1 = inlined_call_operand.hbm [shape: f32[4,8,128], index: 1, kind: input, shape index: {}]
  %s2 = inlined_call_operand.hbm [shape: f32[4,8,128], index: 2, kind: input, shape index: {}]
  %s3 = inlined_call_operand.hbm [shape: f32[5,8,128], index: 3, kind: input, shape index: {}]
  %s4 = inlined_call_operand.hbm [shape: f32[5,8,128], index: 4, kind: input, shape index: {}]
  %s5 = inlined_call_operand.hbm [shape: f32[256,128], index: 5, kind: input, shape index: {}]
  %s6 = inlined_call_operand.vmem [shape: f32[1,128], index: 6, kind: input, shape index: {}]
  %s7 = inlined_call_operand.vmem [shape: f32[1,128], index: 7, kind: input, shape index: {}]
  %s8 = inlined_call_operand.hbm [shape: f32[128,128], index: 8, kind: input, shape index: {}]
  %s9 = inlined_call_operand.vmem [shape: f32[1,128], index: 9, kind: input, shape index: {}]
  %s10 = inlined_call_operand.vmem [shape: f32[1,128], index: 10, kind: input, shape index: {}]
  %s11 = inlined_call_operand.<no memory space> [shape: f32[1,1], index: 11, kind: input, shape index: {}]
  %s12 = inlined_call_operand.hbm [shape: f32[8,128], index: 12, kind: output, shape index: {}]
  %s13 = sld [smem:[#allocation0]]
  $region117: #{tpu_custom_call.1} parent=0
    _
  %s15 = ssub.s32 1, %s13
  %s16 = scalar_select 0, %s15, %s13
  %v17 = vstv %s11
  %18 = vst [vmem:[#allocation6] sm:$0x1] %v17
  $region1: #{tpu_custom_call.1} parent=0
    #allocation7 [shape = 'u8[4096]{0}', space=vmem, size = 0x1000, scoped, tag = 'input window, operand 0, single buffered']
    #allocation8 [shape = 's32[2]{0}', space=sflag, size = 0x8, scoped, tag = 'scoped memory for tpu_custom_call.1']
    #allocation9 [shape = 's32[2]{0}', space=sflag, size = 0x8, scoped, tag = 'scoped memory for tpu_custom_call.1']
    #allocation10 [shape = 'u8[8192]{0}', space=vmem, size = 0x2000, scoped, tag = 'input window, operand 1']
    #allocation11 [shape = 's32[2]{0}', space=sflag, size = 0x8, scoped, tag = 'scoped memory for tpu_custom_call.1']
    #allocation12 [shape = 'u8[4096]{0}', space=vmem, size = 0x1000, scoped, tag = 'input window, operand 2, single buffered']
    #allocation13 [shape = 'u8[8192]{0}', space=vmem, size = 0x2000, scoped, tag = 'input window, operand 3']
    #allocation14 [shape = 's32[2]{0}', space=sflag, size = 0x8, scoped, tag = 'scoped memory for tpu_custom_call.1']
    #allocation15 [shape = 'u8[4096]{0}', space=vmem, size = 0x1000, scoped, tag = 'input window, operand 4, single buffered']
    #allocation16 [shape = 'u8[131072]{0}', space=vmem, size = 0x20000, scoped, tag = 'input window, operand 5, single buffered']
    #allocation17 [shape = 's32[1]{0}', space=sflag, size = 0x4, scoped, tag = 'scoped memory for tpu_custom_call.1']
    #allocation18 [shape = 'u8[65536]{0}', space=vmem, size = 0x10000, scoped, tag = 'input window, operand 8, single buffered']
    #allocation19 [shape = 'u8[4096]{0}', space=vmem, size = 0x1000, scoped, tag = 'output window, operand 0, single buffered']
    %19 = vsyncpa [#allocation8], 0
    %20 = vsyncpa [#allocation11], 0
    %s21 = scalar_lea.sflag [#allocation11], 1
    %22 = vsyncpa %s21, 0
    %23 = vsyncpa [#allocation14], 0
    %s24 = scalar_lea.sflag [#allocation14], 1
    %25 = vsyncpa %s24, 0
    %26 = vsyncpa [#allocation17], 0
    %27 = vsyncpa [#allocation9], 0
    loop: start=0, step=1, limit=6
    $region2: #{tpu_custom_call.1} parent=1 // loop_pre_header
      _
    $region3: #{tpu_custom_call.1} parent=1 // loop_header
      %s29 = sphi 0, %s33
      %p30 = scmp.ge.s32.totalorder %s29, 6
      %s37 = sphi 0, %s37
      %s39 = sphi 0, %s37
      %s40 = sphi 0, %s39
      %s54 = sphi 0, %s40
      %s60 = sphi 0, %s62
      %s63 = sphi 0, %s60
      %s64 = sphi 0, %s63
      %s80 = sphi 0, %s64
      %s84 = sphi 0, %s84
      %s86 = sphi 0, %s84
      %s87 = sphi 0, %s86
      %s101 = sphi 0, %s87
      %s107 = sphi 0, %s109
      %s110 = sphi 0, %s107
      %s111 = sphi 0, %s110
      %s127 = sphi 0, %s111
      %s131 = sphi 0, %s131
      %s133 = sphi 0, %s131
      %s134 = sphi 0, %s133
      %s148 = sphi 0, %s134
      %s152 = sphi 0, %s152
      %s154 = sphi 0, %s152
      %s155 = sphi 0, %s154
      %s169 = sphi 0, %s155
      %s173 = sphi 0, %s173
      %s175 = sphi 0, %s173
      %s176 = sphi 0, %s175
      %s190 = sphi 0, %s176
      %s194 = sphi 0, %s194
      %s196 = sphi 0, %s194
      %s197 = sphi 0, %s196
      %s211 = sphi 0, %s197
      %s215 = sphi 0, %s215
      %s217 = sphi 0, %s215
      %s218 = sphi 0, %s217
      %s232 = sphi 0, %s218
      %s236 = sphi 0, %s236
      %s238 = sphi 0, %s236
      %s239 = sphi 0, %s238
      %s253 = sphi 0, %s239
      %s257 = sphi 0, %s257
      %s259 = sphi 0, %s257
      %s260 = sphi 0, %s259
      %s274 = sphi 0, %s260
      %s278 = sphi 0, %s278
      %s280 = sphi 0, %s278
      %s281 = sphi 0, %s280
      %s295 = sphi 0, %s281
      %s299 = sphi 0, %s299
      %s301 = sphi 0, %s299
      %s302 = sphi 0, %s301
      %s316 = sphi 0, %s302
    $region4: #{tpu_custom_call.1} parent=1 // loop_header_branch
      %32 = sbr.rel (%p30) target = $region8
    $region5: #{tpu_custom_call.1} parent=1 // loop_body
      %s34 = ssub.s32 %s29, 1
      %s35 = ssub.s32 %s29, 2
      %s36 = sadd.s32 %s29, 1
      %s38 = sadd.s32 %s37, 1
      %p41 = scmp.eq.s32.totalorder %s29, 3
      %p42 = scmp.ne.s32.totalorder %s37, %s39
      %p43 = scmp.eq.s32.totalorder %s29, 0
      %p44 = por %p42, %p43
      %p45 = scmp.ne.s32.totalorder %s37, %s39
      %p46 = scmp.eq.s32.totalorder %s34, 3
      %p47 = por %p45, %p46
      %p48 = scmp.ne.s32.totalorder %s39, %s40
      %p49 = scmp.eq.s32.totalorder %s34, 0
      %p50 = por %p48, %p49
      %p51 = scmp.ne.s32.totalorder %s39, %s40
      %p52 = scmp.eq.s32.totalorder %s35, 3
      %p53 = por %p51, %p52
      %p55 = scmp.ne.s32.totalorder %s40, %s54
      %p56 = scmp.eq.s32.totalorder %s35, 0
      %p57 = por %p55, %p56
      %s58 = ssub.s32 %s29, %s36
      %p59 = scmp.eq.s32.totalorder %s58, 0
      %s61 = sadd.s32 %s60, 1
      %s62 = scalar_select %p59, %s60, %s61
      %p65 = pneg %p59
      %p66 = scmp.eq.s32.totalorder %s29, 3
      %p67 = por %p65, %p66
      %p68 = scmp.ne.s32.totalorder %s60, %s63
      %p69 = scmp.eq.s32.totalorder %s29, 0
      %p70 = por %p68, %p69
      %p71 = scmp.ne.s32.totalorder %s60, %s63
      %p72 = scmp.eq.s32.totalorder %s34, 3
      %p73 = por %p71, %p72
      %p74 = scmp.ne.s32.totalorder %s63, %s64
      %p75 = scmp.eq.s32.totalorder %s34, 0
      %p76 = por %p74, %p75
      %p77 = scmp.ne.s32.totalorder %s63, %s64
      %p78 = scmp.eq.s32.totalorder %s35, 3
      %p79 = por %p77, %p78
      %p81 = scmp.ne.s32.totalorder %s64, %s80
      %p82 = scmp.eq.s32.totalorder %s35, 0
      %p83 = por %p81, %p82
      %s85 = sadd.s32 %s84, 1
      %p88 = scmp.eq.s32.totalorder %s29, 3
      %p89 = scmp.ne.s32.totalorder %s84, %s86
      %p90 = scmp.eq.s32.totalorder %s29, 0
      %p91 = por %p89, %p90
      %p92 = scmp.ne.s32.totalorder %s84, %s86
      %p93 = scmp.eq.s32.totalorder %s34, 3
      %p94 = por %p92, %p93
      %p95 = scmp.ne.s32.totalorder %s86, %s87
      %p96 = scmp.eq.s32.totalorder %s34, 0
      %p97 = por %p95, %p96
      %p98 = scmp.ne.s32.totalorder %s86, %s87
      %p99 = scmp.eq.s32.totalorder %s35, 3
      %p100 = por %p98, %p99
      %p102 = scmp.ne.s32.totalorder %s87, %s101
      %p103 = scmp.eq.s32.totalorder %s35, 0
      %p104 = por %p102, %p103
      %s105 = ssub.s32 %s29, %s36
      %p106 = scmp.eq.s32.totalorder %s105, 0
      %s108 = sadd.s32 %s107, 1
      %s109 = scalar_select %p106, %s107, %s108
      %p112 = pneg %p106
      %p113 = scmp.eq.s32.totalorder %s29, 3
      %p114 = por %p112, %p113
      %p115 = scmp.ne.s32.totalorder %s107, %s110
      %p116 = scmp.eq.s32.totalorder %s29, 0
      %p117 = por %p115, %p116
      %p118 = scmp.ne.s32.totalorder %s107, %s110
      %p119 = scmp.eq.s32.totalorder %s34, 3
      %p120 = por %p118, %p119
      %p121 = scmp.ne.s32.totalorder %s110, %s111
      %p122 = scmp.eq.s32.totalorder %s34, 0
      %p123 = por %p121, %p122
      %p124 = scmp.ne.s32.totalorder %s110, %s111
      %p125 = scmp.eq.s32.totalorder %s35, 3
      %p126 = por %p124, %p125
      %p128 = scmp.ne.s32.totalorder %s111, %s127
      %p129 = scmp.eq.s32.totalorder %s35, 0
      %p130 = por %p128, %p129
      %s132 = sadd.s32 %s131, 1
      %p135 = scmp.eq.s32.totalorder %s29, 3
      %p136 = scmp.ne.s32.totalorder %s131, %s133
      %p137 = scmp.eq.s32.totalorder %s29, 0
      %p138 = por %p136, %p137
      %p139 = scmp.ne.s32.totalorder %s131, %s133
      %p140 = scmp.eq.s32.totalorder %s34, 3
      %p141 = por %p139, %p140
      %p142 = scmp.ne.s32.totalorder %s133, %s134
      %p143 = scmp.eq.s32.totalorder %s34, 0
      %p144 = por %p142, %p143
      %p145 = scmp.ne.s32.totalorder %s133, %s134
      %p146 = scmp.eq.s32.totalorder %s35, 3
      %p147 = por %p145, %p146
      %p149 = scmp.ne.s32.totalorder %s134, %s148
      %p150 = scmp.eq.s32.totalorder %s35, 0
      %p151 = por %p149, %p150
      %s153 = sadd.s32 %s152, 1
      %p156 = scmp.eq.s32.totalorder %s29, 3
      %p157 = scmp.ne.s32.totalorder %s152, %s154
      %p158 = scmp.eq.s32.totalorder %s29, 0
      %p159 = por %p157, %p158
      %p160 = scmp.ne.s32.totalorder %s152, %s154
      %p161 = scmp.eq.s32.totalorder %s34, 3
      %p162 = por %p160, %p161
      %p163 = scmp.ne.s32.totalorder %s154, %s155
      %p164 = scmp.eq.s32.totalorder %s34, 0
      %p165 = por %p163, %p164
      %p166 = scmp.ne.s32.totalorder %s154, %s155
      %p167 = scmp.eq.s32.totalorder %s35, 3
      %p168 = por %p166, %p167
      %p170 = scmp.ne.s32.totalorder %s155, %s169
      %p171 = scmp.eq.s32.totalorder %s35, 0
      %p172 = por %p170, %p171
      %s174 = sadd.s32 %s173, 1
      %p177 = scmp.eq.s32.totalorder %s29, 3
      %p178 = scmp.ne.s32.totalorder %s173, %s175
      %p179 = scmp.eq.s32.totalorder %s29, 0
      %p180 = por %p178, %p179
      %p181 = scmp.ne.s32.totalorder %s173, %s175
      %p182 = scmp.eq.s32.totalorder %s34, 3
      %p183 = por %p181, %p182
      %p184 = scmp.ne.s32.totalorder %s175, %s176
      %p185 = scmp.eq.s32.totalorder %s34, 0
      %p186 = por %p184, %p185
      %p187 = scmp.ne.s32.totalorder %s175, %s176
      %p188 = scmp.eq.s32.totalorder %s35, 3
      %p189 = por %p187, %p188
      %p191 = scmp.ne.s32.totalorder %s176, %s190
      %p192 = scmp.eq.s32.totalorder %s35, 0
      %p193 = por %p191, %p192
      %s195 = sadd.s32 %s194, 1
      %p198 = scmp.eq.s32.totalorder %s29, 3
      %p199 = scmp.ne.s32.totalorder %s194, %s196
      %p200 = scmp.eq.s32.totalorder %s29, 0
      %p201 = por %p199, %p200
      %p202 = scmp.ne.s32.totalorder %s194, %s196
      %p203 = scmp.eq.s32.totalorder %s34, 3
      %p204 = por %p202, %p203
      %p205 = scmp.ne.s32.totalorder %s196, %s197
      %p206 = scmp.eq.s32.totalorder %s34, 0
      %p207 = por %p205, %p206
      %p208 = scmp.ne.s32.totalorder %s196, %s197
      %p209 = scmp.eq.s32.totalorder %s35, 3
      %p210 = por %p208, %p209
      %p212 = scmp.ne.s32.totalorder %s197, %s211
      %p213 = scmp.eq.s32.totalorder %s35, 0
      %p214 = por %p212, %p213
      %s216 = sadd.s32 %s215, 1
      %p219 = scmp.eq.s32.totalorder %s29, 3
      %p220 = scmp.ne.s32.totalorder %s215, %s217
      %p221 = scmp.eq.s32.totalorder %s29, 0
      %p222 = por %p220, %p221
      %p223 = scmp.ne.s32.totalorder %s215, %s217
      %p224 = scmp.eq.s32.totalorder %s34, 3
      %p225 = por %p223, %p224
      %p226 = scmp.ne.s32.totalorder %s217, %s218
      %p227 = scmp.eq.s32.totalorder %s34, 0
      %p228 = por %p226, %p227
      %p229 = scmp.ne.s32.totalorder %s217, %s218
      %p230 = scmp.eq.s32.totalorder %s35, 3
      %p231 = por %p229, %p230
      %p233 = scmp.ne.s32.totalorder %s218, %s232
      %p234 = scmp.eq.s32.totalorder %s35, 0
      %p235 = por %p233, %p234
      %s237 = sadd.s32 %s236, 1
      %p240 = scmp.eq.s32.totalorder %s29, 3
      %p241 = scmp.ne.s32.totalorder %s236, %s238
      %p242 = scmp.eq.s32.totalorder %s29, 0
      %p243 = por %p241, %p242
      %p244 = scmp.ne.s32.totalorder %s236, %s238
      %p245 = scmp.eq.s32.totalorder %s34, 3
      %p246 = por %p244, %p245
      %p247 = scmp.ne.s32.totalorder %s238, %s239
      %p248 = scmp.eq.s32.totalorder %s34, 0
      %p249 = por %p247, %p248
      %p250 = scmp.ne.s32.totalorder %s238, %s239
      %p251 = scmp.eq.s32.totalorder %s35, 3
      %p252 = por %p250, %p251
      %p254 = scmp.ne.s32.totalorder %s239, %s253
      %p255 = scmp.eq.s32.totalorder %s35, 0
      %p256 = por %p254, %p255
      %s258 = sadd.s32 %s257, 1
      %p261 = scmp.eq.s32.totalorder %s29, 3
      %p262 = scmp.ne.s32.totalorder %s257, %s259
      %p263 = scmp.eq.s32.totalorder %s29, 0
      %p264 = por %p262, %p263
      %p265 = scmp.ne.s32.totalorder %s257, %s259
      %p266 = scmp.eq.s32.totalorder %s34, 3
      %p267 = por %p265, %p266
      %p268 = scmp.ne.s32.totalorder %s259, %s260
      %p269 = scmp.eq.s32.totalorder %s34, 0
      %p270 = por %p268, %p269
      %p271 = scmp.ne.s32.totalorder %s259, %s260
      %p272 = scmp.eq.s32.totalorder %s35, 3
      %p273 = por %p271, %p272
      %p275 = scmp.ne.s32.totalorder %s260, %s274
      %p276 = scmp.eq.s32.totalorder %s35, 0
      %p277 = por %p275, %p276
      %s279 = sadd.s32 %s278, 1
      %p282 = scmp.eq.s32.totalorder %s29, 3
      %p283 = scmp.ne.s32.totalorder %s278, %s280
      %p284 = scmp.eq.s32.totalorder %s29, 0
      %p285 = por %p283, %p284
      %p286 = scmp.ne.s32.totalorder %s278, %s280
      %p287 = scmp.eq.s32.totalorder %s34, 3
      %p288 = por %p286, %p287
      %p289 = scmp.ne.s32.totalorder %s280, %s281
      %p290 = scmp.eq.s32.totalorder %s34, 0
      %p291 = por %p289, %p290
      %p292 = scmp.ne.s32.totalorder %s280, %s281
      %p293 = scmp.eq.s32.totalorder %s35, 3
      %p294 = por %p292, %p293
      %p296 = scmp.ne.s32.totalorder %s281, %s295
      %p297 = scmp.eq.s32.totalorder %s35, 0
      %p298 = por %p296, %p297
      %s300 = sadd.s32 %s299, 1
      %p303 = scmp.eq.s32.totalorder %s29, 3
      %p304 = scmp.ne.s32.totalorder %s299, %s301
      %p305 = scmp.eq.s32.totalorder %s29, 0
      %p306 = por %p304, %p305
      %p307 = scmp.ne.s32.totalorder %s299, %s301
      %p308 = scmp.eq.s32.totalorder %s34, 3
      %p309 = por %p307, %p308
      %p310 = scmp.ne.s32.totalorder %s301, %s302
      %p311 = scmp.eq.s32.totalorder %s34, 0
      %p312 = por %p310, %p311
      %p313 = scmp.ne.s32.totalorder %s301, %s302
      %p314 = scmp.eq.s32.totalorder %s35, 3
      %p315 = por %p313, %p314
      %p317 = scmp.ne.s32.totalorder %s302, %s316
      %p318 = scmp.eq.s32.totalorder %s35, 0
      %p319 = por %p317, %p318
      %p320 = scmp.le.s32.totalorder 1, %s29
      %p321 = scmp.lt.s32.totalorder %s29, 5
      %p322 = pnand %p320, %p321
      %p323 = pneg %p322
      // Predicated region
      $region9: #{tpu_custom_call.1} parent=5 // pred_check
        _
      $region10: #{tpu_custom_call.1} parent=5 // pred_check_branch
        %325 = sbr.rel (%p322) target = $region12
      $region11: #{tpu_custom_call.1} parent=5 // pred_region
        %s326 = ssub.s32 %s29, 1
        // Predicated region
        $region13: #{tpu_custom_call.1} parent=11 // pred_check
          %p327 = pneg %p50
        $region14: #{tpu_custom_call.1} parent=11 // pred_check_branch
          %329 = sbr.rel (%p327) target = $region16
        $region15: #{tpu_custom_call.1} parent=11 // pred_region
          %s331 = ssub.s32 128, 128
          %332 = vsyncadd [#allocation8], %s331
          %s334 = sshll.u32 [#allocation7], 4
          %s335 = int_to_ptr.vmem [resolvable:$true] %s334
          %337 = dma.hbm_to_vmem [thread:$0]  %s0, 128, %s335, [#allocation8]
        $region16: #{tpu_custom_call.1} parent=11 // pred_fallthru
          _
        // Predicated region
        $region17: #{tpu_custom_call.1} parent=11 // pred_check
          %p338 = pneg %p97
        $region18: #{tpu_custom_call.1} parent=11 // pred_check_branch
          %340 = sbr.rel (%p338) target = $region20
        $region19: #{tpu_custom_call.1} parent=11 // pred_region
          %s342 = ssub.s32 128, 128
          %343 = vsyncadd [#allocation11], %s342
          %s344 = scalar_lea.hbm %s2, 384
          %s346 = sshll.u32 [#allocation12], 4
          %s347 = int_to_ptr.vmem [resolvable:$true] %s346
          %349 = dma.hbm_to_vmem [thread:$0]  %s344, 128, %s347, [#allocation11]
        $region20: #{tpu_custom_call.1} parent=11 // pred_fallthru
          _
        // Predicated region
        $region21: #{tpu_custom_call.1} parent=11 // pred_check
          %p350 = pneg %p144
        $region22: #{tpu_custom_call.1} parent=11 // pred_check_branch
          %352 = sbr.rel (%p350) target = $region24
        $region23: #{tpu_custom_call.1} parent=11 // pred_region
          %s354 = ssub.s32 128, 128
          %355 = vsyncadd [#allocation14], %s354
          %s356 = scalar_lea.hbm %s4, 512
          %s358 = sshll.u32 [#allocation15], 4
          %s359 = int_to_ptr.vmem [resolvable:$true] %s358
          %361 = dma.hbm_to_vmem [thread:$0]  %s356, 128, %s359, [#allocation14]
        $region24: #{tpu_custom_call.1} parent=11 // pred_fallthru
          _
        // Predicated region
        $region25: #{tpu_custom_call.1} parent=11 // pred_check
          %p362 = pneg %p165
        $region26: #{tpu_custom_call.1} parent=11 // pred_check_branch
          %364 = sbr.rel (%p362) target = $region28
        $region27: #{tpu_custom_call.1} parent=11 // pred_region
          %s366 = ssub.s32 4096, 4096
          %367 = vsyncadd [#allocation17], %s366
          %s368 = sshll.u32 [#allocation16], 4
          %s369 = int_to_ptr.vmem [resolvable:$true] %s368
          %374 = dma.hbm_to_vmem [thread:$0]  %s5, 4096, %s369, [#allocation17], 128, 128, 8
        $region28: #{tpu_custom_call.1} parent=11 // pred_fallthru
          _
        // Predicated region
        $region29: #{tpu_custom_call.1} parent=11 // pred_check
          %p375 = pneg %p186
        $region30: #{tpu_custom_call.1} parent=11 // pred_check_branch
          %377 = sbr.rel (%p375) target = $region32
        $region31: #{tpu_custom_call.1} parent=11 // pred_region
          _
        $region32: #{tpu_custom_call.1} parent=11 // pred_fallthru
          _
        // Predicated region
        $region33: #{tpu_custom_call.1} parent=11 // pred_check
          %p378 = pneg %p207
        $region34: #{tpu_custom_call.1} parent=11 // pred_check_branch
          %380 = sbr.rel (%p378) target = $region36
        $region35: #{tpu_custom_call.1} parent=11 // pred_region
          _
        $region36: #{tpu_custom_call.1} parent=11 // pred_fallthru
          _
        // Predicated region
        $region37: #{tpu_custom_call.1} parent=11 // pred_check
          %p381 = pneg %p228
        $region38: #{tpu_custom_call.1} parent=11 // pred_check_branch
          %383 = sbr.rel (%p381) target = $region40
        $region39: #{tpu_custom_call.1} parent=11 // pred_region
          %s385 = ssub.s32 2048, 2048
          %386 = vsyncadd [#allocation17], %s385
          %s387 = sshll.u32 [#allocation18], 4
          %s388 = int_to_ptr.vmem [resolvable:$true] %s387
          %393 = dma.hbm_to_vmem [thread:$0]  %s8, 2048, %s388, [#allocation17], 128, 128, 8
        $region40: #{tpu_custom_call.1} parent=11 // pred_fallthru
          _
        // Predicated region
        $region41: #{tpu_custom_call.1} parent=11 // pred_check
          %p394 = pneg %p249
        $region42: #{tpu_custom_call.1} parent=11 // pred_check_branch
          %396 = sbr.rel (%p394) target = $region44
        $region43: #{tpu_custom_call.1} parent=11 // pred_region
          _
        $region44: #{tpu_custom_call.1} parent=11 // pred_fallthru
          _
        // Predicated region
        $region45: #{tpu_custom_call.1} parent=11 // pred_check
          %p397 = pneg %p270
        $region46: #{tpu_custom_call.1} parent=11 // pred_check_branch
          %399 = sbr.rel (%p397) target = $region48
        $region47: #{tpu_custom_call.1} parent=11 // pred_region
          _
        $region48: #{tpu_custom_call.1} parent=11 // pred_fallthru
          _
        // Predicated region
        $region49: #{tpu_custom_call.1} parent=11 // pred_check
          %p400 = pneg %p291
        $region50: #{tpu_custom_call.1} parent=11 // pred_check_branch
          %402 = sbr.rel (%p400) target = $region52
        $region51: #{tpu_custom_call.1} parent=11 // pred_region
          _
        $region52: #{tpu_custom_call.1} parent=11 // pred_fallthru
          _
      $region12: #{tpu_custom_call.1} parent=5 // pred_fallthru
        _
      %p403 = scmp.lt.s32.totalorder %s29, 4
      // Predicated region
      $region53: #{tpu_custom_call.1} parent=5 // pred_check
        %p404 = pneg %p403
      $region54: #{tpu_custom_call.1} parent=5 // pred_check_branch
        %406 = sbr.rel (%p404) target = $region56
      $region55: #{tpu_custom_call.1} parent=5 // pred_region
        // Predicated region
        $region57: #{tpu_custom_call.1} parent=55 // pred_check
          %p407 = pneg %p70
        $region58: #{tpu_custom_call.1} parent=55 // pred_check_branch
          %409 = sbr.rel (%p407) target = $region60
        $region59: #{tpu_custom_call.1} parent=55 // pred_region
          %s410 = sand.u32 %s29, 1
          %s411 = scalar_lea.sflag [#allocation11], %s410
          %s412 = sand.u32 %s60, 1
          %s413 = smul.addr %s412, 8
          %s414 = scalar_lea.vmem [#allocation10], %s413
          %s416 = ssub.s32 128, 128
          %417 = vsyncadd %s411, %s416
          %s418 = smul.addr %s29, 128
          %s419 = scalar_lea.hbm %s1, %s418
          %s421 = sshll.u32 %s414, 4
          %s422 = int_to_ptr.vmem [resolvable:$true] %s421
          %424 = dma.hbm_to_vmem [thread:$0]  %s419, 128, %s422, %s411
        $region60: #{tpu_custom_call.1} parent=55 // pred_fallthru
          _
        // Predicated region
        $region61: #{tpu_custom_call.1} parent=55 // pred_check
          %p425 = pneg %p117
        $region62: #{tpu_custom_call.1} parent=55 // pred_check_branch
          %427 = sbr.rel (%p425) target = $region64
        $region63: #{tpu_custom_call.1} parent=55 // pred_region
          %s428 = sand.u32 %s29, 1
          %s429 = scalar_lea.sflag [#allocation14], %s428
          %s430 = sand.u32 %s107, 1
          %s431 = smul.addr %s430, 8
          %s432 = scalar_lea.vmem [#allocation13], %s431
          %s434 = ssub.s32 128, 128
          %435 = vsyncadd %s429, %s434
          %s436 = smul.addr %s29, 128
          %s437 = scalar_lea.hbm %s3, %s436
          %s439 = sshll.u32 %s432, 4
          %s440 = int_to_ptr.vmem [resolvable:$true] %s439
          %442 = dma.hbm_to_vmem [thread:$0]  %s437, 128, %s440, %s429
        $region64: #{tpu_custom_call.1} parent=55 // pred_fallthru
          _
      $region56: #{tpu_custom_call.1} parent=5 // pred_fallthru
        _
      %p443 = scmp.le.s32.totalorder 1, %s29
      %p444 = scmp.lt.s32.totalorder %s29, 5
      %p445 = pnand %p443, %p444
      %p446 = pneg %p445
      // Predicated region
      $region65: #{tpu_custom_call.1} parent=5 // pred_check
        _
      $region66: #{tpu_custom_call.1} parent=5 // pred_check_branch
        %448 = sbr.rel (%p445) target = $region68
      $region67: #{tpu_custom_call.1} parent=5 // pred_region
        %s449 = ssub.s32 %s29, 1
        // Predicated region
        $region69: #{tpu_custom_call.1} parent=67 // pred_check
          %p450 = pneg %p50
        $region70: #{tpu_custom_call.1} parent=67 // pred_check_branch
          %452 = sbr.rel (%p450) target = $region72
        $region71: #{tpu_custom_call.1} parent=67 // pred_region
          %453 = dma.done [#allocation8], 128
        $region72: #{tpu_custom_call.1} parent=67 // pred_fallthru
          _
        %s454 = sand.u32 %s34, 1
        %s455 = scalar_lea.sflag [#allocation11], %s454
        %s456 = sand.u32 %s63, 1
        %s457 = smul.addr %s456, 8
        %s458 = scalar_lea.vmem [#allocation10], %s457
        // Predicated region
        $region73: #{tpu_custom_call.1} parent=67 // pred_check
          %p459 = pneg %p76
        $region74: #{tpu_custom_call.1} parent=67 // pred_check_branch
          %461 = sbr.rel (%p459) target = $region76
        $region75: #{tpu_custom_call.1} parent=67 // pred_region
          %462 = dma.done %s455, 128
        $region76: #{tpu_custom_call.1} parent=67 // pred_fallthru
          _
        // Predicated region
        $region77: #{tpu_custom_call.1} parent=67 // pred_check
          %p463 = pneg %p97
        $region78: #{tpu_custom_call.1} parent=67 // pred_check_branch
          %465 = sbr.rel (%p463) target = $region80
        $region79: #{tpu_custom_call.1} parent=67 // pred_region
          %466 = dma.done [#allocation11], 128
        $region80: #{tpu_custom_call.1} parent=67 // pred_fallthru
          _
        %s467 = sand.u32 %s34, 1
        %s468 = scalar_lea.sflag [#allocation14], %s467
        %s469 = sand.u32 %s110, 1
        %s470 = smul.addr %s469, 8
        %s471 = scalar_lea.vmem [#allocation13], %s470
        // Predicated region
        $region81: #{tpu_custom_call.1} parent=67 // pred_check
          %p472 = pneg %p123
        $region82: #{tpu_custom_call.1} parent=67 // pred_check_branch
          %474 = sbr.rel (%p472) target = $region84
        $region83: #{tpu_custom_call.1} parent=67 // pred_region
          %475 = dma.done %s468, 128
        $region84: #{tpu_custom_call.1} parent=67 // pred_fallthru
          _
        // Predicated region
        $region85: #{tpu_custom_call.1} parent=67 // pred_check
          %p476 = pneg %p144
        $region86: #{tpu_custom_call.1} parent=67 // pred_check_branch
          %478 = sbr.rel (%p476) target = $region88
        $region87: #{tpu_custom_call.1} parent=67 // pred_region
          %479 = dma.done [#allocation14], 128
        $region88: #{tpu_custom_call.1} parent=67 // pred_fallthru
          _
        // Predicated region
        $region89: #{tpu_custom_call.1} parent=67 // pred_check
          %p480 = pneg %p165
        $region90: #{tpu_custom_call.1} parent=67 // pred_check_branch
          %482 = sbr.rel (%p480) target = $region92
        $region91: #{tpu_custom_call.1} parent=67 // pred_region
          %483 = dma.done [#allocation17], 4096
        $region92: #{tpu_custom_call.1} parent=67 // pred_fallthru
          _
        // Predicated region
        $region93: #{tpu_custom_call.1} parent=67 // pred_check
          %p484 = pneg %p228
        $region94: #{tpu_custom_call.1} parent=67 // pred_check_branch
          %486 = sbr.rel (%p484) target = $region96
        $region95: #{tpu_custom_call.1} parent=67 // pred_region
          %487 = dma.done [#allocation17], 2048
        $region96: #{tpu_custom_call.1} parent=67 // pred_fallthru
          _
        %p488 = pneg %p50
        %p489 = pneg %p47
        %s490 = sand.u32 %s34, 1
        %s491 = scalar_lea.sflag [#allocation11], %s490
        %s492 = sand.u32 %s63, 1
        %s493 = smul.addr %s492, 8
        %s494 = scalar_lea.vmem [#allocation10], %s493
        %p495 = pneg %p76
        %p496 = pneg %p73
        %p497 = pneg %p97
        %p498 = pneg %p94
        %s499 = sand.u32 %s34, 1
        %s500 = scalar_lea.sflag [#allocation14], %s499
        %s501 = sand.u32 %s110, 1
        %s502 = smul.addr %s501, 8
        %s503 = scalar_lea.vmem [#allocation13], %s502
        %p504 = pneg %p123
        %p505 = pneg %p120
        %p506 = pneg %p144
        %p507 = pneg %p141
        %p508 = pneg %p165
        %p509 = pneg %p162
        %p510 = pneg %p186
        %p511 = pneg %p183
        %p512 = pneg %p207
        %p513 = pneg %p204
        %p514 = pneg %p228
        %p515 = pneg %p225
        %p516 = pneg %p249
        %p517 = pneg %p246
        %p518 = pneg %p270
        %p519 = pneg %p267
        %p520 = pneg %p291
        %p521 = pneg %p288
        %p522 = pneg %p312
        %p523 = pneg %p309
        %p524 = scmp.eq.s32.totalorder %s34, 0
        // Predicated region
        $region97: #{tpu_custom_call.1} parent=67 // pred_check
          %p525 = pneg %p524
        $region98: #{tpu_custom_call.1} parent=67 // pred_check_branch
          %527 = sbr.rel (%p525) target = $region100
        $region99: #{tpu_custom_call.1} parent=67 // pred_region
          %v528 = vld [vmem:[#allocation15] sm:$0xff]
          %v529 = vld [vmem:[%s7] sm:$0x1]
          %v531 = vlaneseq
          %v532 = vshrl.u32 %v531, 7
          %v533 = vsub.s32 0, %v532
          %v534 = vrot.slane %v529, %v533
          %v536 = vmul.f32 %v528, %v534
          %537 = vst [vmem:[#allocation2] sm:$0xff] %v536
          %vm538 = vcmask 7168
          %539 = vst.msk [vmem:[#allocation3] sm:$0xff] %vm538, -inf
          %540 = vst.msk [vmem:[#allocation4] sm:$0xff] %vm538, 0.0
          %541 = vst [vmem:[#allocation5] sm:$0xff] 0.0
        $region100: #{tpu_custom_call.1} parent=67 // pred_fallthru
          _
        %v542 = vld [vmem:[%s458] sm:$0xff]
        %v543 = vld [vmem:[%s471] sm:$0xff]
        %v544 = vld [vmem:[#allocation2] sm:$0xff]
        %v545 = vmul.f32 %v543, %v544
        %546 = vadd.xlane.f32.xlu0 %v545
        %v547 = vpop.xlane.xlu0 %546
        %v548 = vld [vmem:[#allocation3] sm:$0xff]
        %v549 = vmax.f32 %v548, %v547
        %v550 = vsub.f32 %v548, %v549
        %v551 = vmul.f32 %v550, 1.442695
        %v552 = vpow.pop %v551
        %v553 = vsub.f32 %v547, %v549
        %v554 = vmul.f32 %v553, 1.442695
        %v555 = vpow.pop %v554
        %v556 = vld [vmem:[#allocation4] sm:$0xff]
        %v557 = vmul.f32 %v552, %v556
        %v558 = vadd.f32 %v557, %v555
        %vm559 = vcmask 7168
        %560 = vst.msk [vmem:[#allocation4] sm:$0xff] %vm559, %v558
        %v561 = vld [vmem:[#allocation5] sm:$0xff]
        %563 = vset.pattern.permute.xlu0 0
        %564 = vperm.xlu0 %563, %v552
        %v565 = vpop.permute.xlu0 %564
        %v567 = vmul.f32 %v565, %v561
        %569 = vset.pattern.permute.xlu0 0
        %570 = vperm.xlu0 %569, %v555
        %v571 = vpop.permute.xlu0 %570
        %v573 = vmul.f32 %v571, %v542
        %v574 = vadd.f32 %v567, %v573
        %575 = vst [vmem:[#allocation5] sm:$0xff] %v574
        %576 = vst.msk [vmem:[#allocation3] sm:$0xff] %vm559, %v549
        %p577 = scmp.eq.s32.totalorder %s34, 3
        // Predicated region
        $region101: #{tpu_custom_call.1} parent=67 // pred_check
          %p578 = pneg %p577
        $region102: #{tpu_custom_call.1} parent=67 // pred_check_branch
          %580 = sbr.rel (%p578) target = $region104
        $region103: #{tpu_custom_call.1} parent=67 // pred_region
          %v581 = vld [vmem:[#allocation12] sm:$0xff]
          %v582 = vld [vmem:[#allocation7] sm:$0xff]
          %v583 = vld [vmem:[#allocation15] sm:$0xff]
          %v584 = vld [vmem:[#allocation16] sm:$0xff]
          %v585 = vld [vmem:[#allocation16 + $0x8] sm:$0xff]
          %v586 = vld [vmem:[#allocation16 + $0x10] sm:$0xff]
          %v587 = vld [vmem:[#allocation16 + $0x18] sm:$0xff]
          %v588 = vld [vmem:[#allocation16 + $0x20] sm:$0xff]
          %v589 = vld [vmem:[#allocation16 + $0x28] sm:$0xff]
          %v590 = vld [vmem:[#allocation16 + $0x30] sm:$0xff]
          %v591 = vld [vmem:[#allocation16 + $0x38] sm:$0xff]
          %v592 = vld [vmem:[#allocation16 + $0x40] sm:$0xff]
          %v593 = vld [vmem:[#allocation16 + $0x48] sm:$0xff]
          %v594 = vld [vmem:[#allocation16 + $0x50] sm:$0xff]
          %v595 = vld [vmem:[#allocation16 + $0x58] sm:$0xff]
          %v596 = vld [vmem:[#allocation16 + $0x60] sm:$0xff]
          %v597 = vld [vmem:[#allocation16 + $0x68] sm:$0xff]
          %v598 = vld [vmem:[#allocation16 + $0x70] sm:$0xff]
          %v599 = vld [vmem:[#allocation16 + $0x78] sm:$0xff]
          %v600 = vld [vmem:[#allocation16 + $0x80] sm:$0xff]
          %v601 = vld [vmem:[#allocation16 + $0x88] sm:$0xff]
          %v602 = vld [vmem:[#allocation16 + $0x90] sm:$0xff]
          %v603 = vld [vmem:[#allocation16 + $0x98] sm:$0xff]
          %v604 = vld [vmem:[#allocation16 + $0xa0] sm:$0xff]
          %v605 = vld [vmem:[#allocation16 + $0xa8] sm:$0xff]
          %v606 = vld [vmem:[#allocation16 + $0xb0] sm:$0xff]
          %v607 = vld [vmem:[#allocation16 + $0xb8] sm:$0xff]
          %v608 = vld [vmem:[#allocation16 + $0xc0] sm:$0xff]
          %v609 = vld [vmem:[#allocation16 + $0xc8] sm:$0xff]
          %v610 = vld [vmem:[#allocation16 + $0xd0] sm:$0xff]
          %v611 = vld [vmem:[#allocation16 + $0xd8] sm:$0xff]
          %v612 = vld [vmem:[#allocation16 + $0xe0] sm:$0xff]
          %v613 = vld [vmem:[#allocation16 + $0xe8] sm:$0xff]
          %v614 = vld [vmem:[#allocation16 + $0xf0] sm:$0xff]
          %v615 = vld [vmem:[#allocation16 + $0xf8] sm:$0xff]
          %616 = vmatprep.subr.mxu0 0.0
          %617 = vmatpush1.msra.mxu0 %v600
          %618 = vmatprep.subr.mxu0 0.0
          %619 = vmatpush1.msra.mxu0 %v601
          %620 = vmatprep.subr.mxu0 0.0
          %621 = vmatpush1.msra.mxu0 %v602
          %622 = vmatprep.subr.mxu0 0.0
          %623 = vmatpush1.msra.mxu0 %v603
          %624 = vmatprep.subr.mxu0 0.0
          %625 = vmatpush1.msra.mxu0 %v604
          %626 = vmatprep.subr.mxu0 0.0
          %627 = vmatpush1.msra.mxu0 %v605
          %628 = vmatprep.subr.mxu0 0.0
          %629 = vmatpush1.msra.mxu0 %v606
          %630 = vmatprep.subr.mxu0 0.0
          %631 = vmatpush1.msra.mxu0 %v607
          %632 = vmatprep.subr.mxu0 0.0
          %633 = vmatpush1.msra.mxu0 %v608
          %634 = vmatprep.subr.mxu0 0.0
          %635 = vmatpush1.msra.mxu0 %v609
          %636 = vmatprep.subr.mxu0 0.0
          %637 = vmatpush1.msra.mxu0 %v610
          %638 = vmatprep.subr.mxu0 0.0
          %639 = vmatpush1.msra.mxu0 %v611
          %640 = vmatprep.subr.mxu0 0.0
          %641 = vmatpush1.msra.mxu0 %v612
          %642 = vmatprep.subr.mxu0 0.0
          %643 = vmatpush1.msra.mxu0 %v613
          %644 = vmatprep.subr.mxu0 0.0
          %645 = vmatpush1.msra.mxu0 %v614
          %646 = vmatprep.subr.mxu0 0.0
          %647 = vmatpush1.msra.mxu0 %v615
          %648 = vmatprep.subr.mxu0 0.0
          %649 = vmatpush1.msra.mxu0 0.0
          %650 = vmatprep.subr.mxu0 0.0
          %651 = vmatpush1.msra.mxu0 0.0
          %652 = vmatprep.subr.mxu0 0.0
          %653 = vmatpush1.msra.mxu0 0.0
          %654 = vmatprep.subr.mxu0 0.0
          %655 = vmatpush1.msra.mxu0 0.0
          %656 = vmatprep.subr.mxu0 0.0
          %657 = vmatpush1.msra.mxu0 0.0
          %658 = vmatprep.subr.mxu0 0.0
          %659 = vmatpush1.msra.mxu0 0.0
          %660 = vmatprep.subr.mxu0 0.0
          %661 = vmatpush1.msra.mxu0 0.0
          %662 = vmatprep.subr.mxu0 0.0
          %663 = vmatpush1.msra.mxu0 0.0
          %664 = vmatprep.subr.mxu0 0.0
          %665 = vmatpush1.msra.mxu0 0.0
          %666 = vmatprep.subr.mxu0 0.0
          %667 = vmatpush1.msra.mxu0 0.0
          %668 = vmatprep.subr.mxu0 0.0
          %669 = vmatpush1.msra.mxu0 0.0
          %670 = vmatprep.subr.mxu0 0.0
          %671 = vmatpush1.msra.mxu0 0.0
          %672 = vmatprep.subr.mxu0 0.0
          %673 = vmatpush1.msra.mxu0 0.0
          %674 = vmatprep.subr.mxu0 0.0
          %675 = vmatpush1.msra.mxu0 0.0
          %676 = vmatprep.subr.mxu0 0.0
          %677 = vmatpush1.msra.mxu0 0.0
          %678 = vmatprep.subr.mxu0 0.0
          %679 = vmatpush1.msra.mxu0 0.0
          %680 = vmatprep.mubr.f32.mxu0 0.0
          %681 = vmatmul.mubr.f32.gmra.mrb[0].mxu0 %v581
          %v682 = vpop.f32.mrb[0].mxu0
          %v683 = vadd.f32 0.0, %v682
          %v684 = vpop.f32.mrb[0].mxu0
          %685 = vdwg.mxu0
          %686 = vmatprep.subr.mxu0 0.0
          %687 = vmatpush1.msra.mxu0 %v584
          %688 = vmatprep.subr.mxu0 0.0
          %689 = vmatpush1.msra.mxu0 %v585
          %690 = vmatprep.subr.mxu0 0.0
          %691 = vmatpush1.msra.mxu0 %v586
          %692 = vmatprep.subr.mxu0 0.0
          %693 = vmatpush1.msra.mxu0 %v587
          %694 = vmatprep.subr.mxu0 0.0
          %695 = vmatpush1.msra.mxu0 %v588
          %696 = vmatprep.subr.mxu0 0.0
          %697 = vmatpush1.msra.mxu0 %v589
          %698 = vmatprep.subr.mxu0 0.0
          %699 = vmatpush1.msra.mxu0 %v590
          %700 = vmatprep.subr.mxu0 0.0
          %701 = vmatpush1.msra.mxu0 %v591
          %702 = vmatprep.subr.mxu0 0.0
          %703 = vmatpush1.msra.mxu0 %v592
          %704 = vmatprep.subr.mxu0 0.0
          %705 = vmatpush1.msra.mxu0 %v593
          %706 = vmatprep.subr.mxu0 0.0
          %707 = vmatpush1.msra.mxu0 %v594
          %708 = vmatprep.subr.mxu0 0.0
          %709 = vmatpush1.msra.mxu0 %v595
          %710 = vmatprep.subr.mxu0 0.0
          %711 = vmatpush1.msra.mxu0 %v596
          %712 = vmatprep.subr.mxu0 0.0
          %713 = vmatpush1.msra.mxu0 %v597
          %714 = vmatprep.subr.mxu0 0.0
          %715 = vmatpush1.msra.mxu0 %v598
          %716 = vmatprep.subr.mxu0 0.0
          %717 = vmatpush1.msra.mxu0 %v599
          %718 = vmatprep.subr.mxu0 0.0
          %719 = vmatpush1.msra.mxu0 0.0
          %720 = vmatprep.subr.mxu0 0.0
          %721 = vmatpush1.msra.mxu0 0.0
          %722 = vmatprep.subr.mxu0 0.0
          %723 = vmatpush1.msra.mxu0 0.0
          %724 = vmatprep.subr.mxu0 0.0
          %725 = vmatpush1.msra.mxu0 0.0
          %726 = vmatprep.subr.mxu0 0.0
          %727 = vmatpush1.msra.mxu0 0.0
          %728 = vmatprep.subr.mxu0 0.0
          %729 = vmatpush1.msra.mxu0 0.0
          %730 = vmatprep.subr.mxu0 0.0
          %731 = vmatpush1.msra.mxu0 0.0
          %732 = vmatprep.subr.mxu0 0.0
          %733 = vmatpush1.msra.mxu0 0.0
          %734 = vmatprep.subr.mxu0 0.0
          %735 = vmatpush1.msra.mxu0 0.0
          %736 = vmatprep.subr.mxu0 0.0
          %737 = vmatpush1.msra.mxu0 0.0
          %738 = vmatprep.subr.mxu0 0.0
          %739 = vmatpush1.msra.mxu0 0.0
          %740 = vmatprep.subr.mxu0 0.0
          %741 = vmatpush1.msra.mxu0 0.0
          %742 = vmatprep.subr.mxu0 0.0
          %743 = vmatpush1.msra.mxu0 0.0
          %744 = vmatprep.subr.mxu0 0.0
          %745 = vmatpush1.msra.mxu0 0.0
          %746 = vmatprep.subr.mxu0 0.0
          %747 = vmatpush1.msra.mxu0 0.0
          %748 = vmatprep.subr.mxu0 0.0
          %749 = vmatpush1.msra.mxu0 0.0
          %750 = vmatprep.mubr.f32.mxu0 0.0
          %751 = vmatmul.mubr.f32.gmra.mrb[0].mxu0 %v582
          %v752 = vpop.f32.mrb[0].mxu0
          %v753 = vadd.f32 %v683, %v752
          %v754 = vpop.f32.mrb[0].mxu0
          %755 = vdwg.mxu0
          %v756 = vld [vmem:[%s6] sm:$0x1]
          %v758 = vlaneseq
          %v759 = vshrl.u32 %v758, 7
          %v760 = vsub.s32 0, %v759
          %v761 = vrot.slane %v756, %v760
          %v763 = vadd.f32 %v753, %v761
          %v764 = vld [vmem:[#allocation5] sm:$0xff]
          %v765 = vld [vmem:[#allocation4] sm:$0xff]
          %v766 = vrcp.pop %v765
          %768 = vset.pattern.permute.xlu0 0
          %769 = vperm.xlu0 %768, %v766
          %v770 = vpop.permute.xlu0 %769
          %v772 = vmul.f32 %v764, %v770
          %v773 = vld [vmem:[#allocation18] sm:$0xff]
          %v774 = vld [vmem:[#allocation18 + $0x8] sm:$0xff]
          %v775 = vld [vmem:[#allocation18 + $0x10] sm:$0xff]
          %v776 = vld [vmem:[#allocation18 + $0x18] sm:$0xff]
          %v777 = vld [vmem:[#allocation18 + $0x20] sm:$0xff]
          %v778 = vld [vmem:[#allocation18 + $0x28] sm:$0xff]
          %v779 = vld [vmem:[#allocation18 + $0x30] sm:$0xff]
          %v780 = vld [vmem:[#allocation18 + $0x38] sm:$0xff]
          %v781 = vld [vmem:[#allocation18 + $0x40] sm:$0xff]
          %v782 = vld [vmem:[#allocation18 + $0x48] sm:$0xff]
          %v783 = vld [vmem:[#allocation18 + $0x50] sm:$0xff]
          %v784 = vld [vmem:[#allocation18 + $0x58] sm:$0xff]
          %v785 = vld [vmem:[#allocation18 + $0x60] sm:$0xff]
          %v786 = vld [vmem:[#allocation18 + $0x68] sm:$0xff]
          %v787 = vld [vmem:[#allocation18 + $0x70] sm:$0xff]
          %v788 = vld [vmem:[#allocation18 + $0x78] sm:$0xff]
          %v789 = vld [vmem:[%s9] sm:$0x1]
          %v791 = vlaneseq
          %v792 = vshrl.u32 %v791, 7
          %v793 = vsub.s32 0, %v792
          %v794 = vrot.slane %v789, %v793
          %796 = vmatprep.subr.mxu0 0.0
          %797 = vmatpush1.msra.mxu0 %v773
          %798 = vmatprep.subr.mxu0 0.0
          %799 = vmatpush1.msra.mxu0 %v774
          %800 = vmatprep.subr.mxu0 0.0
          %801 = vmatpush1.msra.mxu0 %v775
          %802 = vmatprep.subr.mxu0 0.0
          %803 = vmatpush1.msra.mxu0 %v776
          %804 = vmatprep.subr.mxu0 0.0
          %805 = vmatpush1.msra.mxu0 %v777
          %806 = vmatprep.subr.mxu0 0.0
          %807 = vmatpush1.msra.mxu0 %v778
          %808 = vmatprep.subr.mxu0 0.0
          %809 = vmatpush1.msra.mxu0 %v779
          %810 = vmatprep.subr.mxu0 0.0
          %811 = vmatpush1.msra.mxu0 %v780
          %812 = vmatprep.subr.mxu0 0.0
          %813 = vmatpush1.msra.mxu0 %v781
          %814 = vmatprep.subr.mxu0 0.0
          %815 = vmatpush1.msra.mxu0 %v782
          %816 = vmatprep.subr.mxu0 0.0
          %817 = vmatpush1.msra.mxu0 %v783
          %818 = vmatprep.subr.mxu0 0.0
          %819 = vmatpush1.msra.mxu0 %v784
          %820 = vmatprep.subr.mxu0 0.0
          %821 = vmatpush1.msra.mxu0 %v785
          %822 = vmatprep.subr.mxu0 0.0
          %823 = vmatpush1.msra.mxu0 %v786
          %824 = vmatprep.subr.mxu0 0.0
          %825 = vmatpush1.msra.mxu0 %v787
          %826 = vmatprep.subr.mxu0 0.0
          %827 = vmatpush1.msra.mxu0 %v788
          %828 = vmatprep.subr.mxu0 0.0
          %829 = vmatpush1.msra.mxu0 0.0
          %830 = vmatprep.subr.mxu0 0.0
          %831 = vmatpush1.msra.mxu0 0.0
          %832 = vmatprep.subr.mxu0 0.0
          %833 = vmatpush1.msra.mxu0 0.0
          %834 = vmatprep.subr.mxu0 0.0
          %835 = vmatpush1.msra.mxu0 0.0
          %836 = vmatprep.subr.mxu0 0.0
          %837 = vmatpush1.msra.mxu0 0.0
          %838 = vmatprep.subr.mxu0 0.0
          %839 = vmatpush1.msra.mxu0 0.0
          %840 = vmatprep.subr.mxu0 0.0
          %841 = vmatpush1.msra.mxu0 0.0
          %842 = vmatprep.subr.mxu0 0.0
          %843 = vmatpush1.msra.mxu0 0.0
          %844 = vmatprep.subr.mxu0 0.0
          %845 = vmatpush1.msra.mxu0 0.0
          %846 = vmatprep.subr.mxu0 0.0
          %847 = vmatpush1.msra.mxu0 0.0
          %848 = vmatprep.subr.mxu0 0.0
          %849 = vmatpush1.msra.mxu0 0.0
          %850 = vmatprep.subr.mxu0 0.0
          %851 = vmatpush1.msra.mxu0 0.0
          %852 = vmatprep.subr.mxu0 0.0
          %853 = vmatpush1.msra.mxu0 0.0
          %854 = vmatprep.subr.mxu0 0.0
          %855 = vmatpush1.msra.mxu0 0.0
          %856 = vmatprep.subr.mxu0 0.0
          %857 = vmatpush1.msra.mxu0 0.0
          %858 = vmatprep.subr.mxu0 0.0
          %859 = vmatpush1.msra.mxu0 0.0
          %860 = vmatprep.mubr.f32.mxu0 0.0
          %861 = vmatmul.mubr.f32.gmra.mrb[0].mxu0 %v772
          %v862 = vpop.f32.mrb[0].mxu0
          %v863 = vadd.f32 %v794, %v862
          %v864 = vpop.f32.mrb[0].mxu0
          %865 = vdwg.mxu0
          %v866 = vadd.f32 %v863, %v763
          %v867 = vld [vmem:[%s10] sm:$0x1]
          %v869 = vlaneseq
          %v870 = vshrl.u32 %v869, 7
          %v871 = vsub.s32 0, %v870
          %v872 = vrot.slane %v867, %v871
          %v874 = vmul.f32 %v583, %v872
          %875 = vadd.xlane.f32.xlu0 %v874
          %v876 = vpop.xlane.xlu0 %875
          %v877 = vld [vmem:[#allocation6] sm:$0x1]
          %v879 = vlaneseq
          %v880 = vshrl.u32 %v879, 7
          %v881 = vsub.s32 0, %v880
          %v882 = vrot.slane %v877, %v881
          %v884 = vadd.f32 %v876, %v882
          %v885 = vxor.u32 %v884, 2147483648
          %v886 = vmul.f32 %v885, 1.442695
          %v887 = vpow.pop %v886
          %v888 = vadd.f32 %v887, 1.0
          %v889 = vrcp.pop %v888
          %v890 = vmul.f32 1.0, %v889
          %892 = vset.pattern.permute.xlu0 0
          %893 = vperm.xlu0 %892, %v890
          %v894 = vpop.permute.xlu0 %893
          %v896 = vmul.f32 %v894, %v581
          %v897 = vsub.f32 1.0, %v890
          %899 = vset.pattern.permute.xlu0 0
          %900 = vperm.xlu0 %899, %v897
          %v901 = vpop.permute.xlu0 %900
          %v903 = vmul.f32 %v901, %v866
          %v904 = vadd.f32 %v896, %v903
          %905 = vst [vmem:[#allocation19] sm:$0xff] %v904
        $region104: #{tpu_custom_call.1} parent=67 // pred_fallthru
          _
        // Predicated region
        $region105: #{tpu_custom_call.1} parent=67 // pred_check
          %p906 = pneg %p309
        $region106: #{tpu_custom_call.1} parent=67 // pred_check_branch
          %908 = sbr.rel (%p906) target = $region108
        $region107: #{tpu_custom_call.1} parent=67 // pred_region
          %s910 = ssub.s32 128, 128
          %911 = vsyncadd [#allocation9], %s910
          %s913 = sshll.u32 [#allocation19], 4
          %s914 = int_to_ptr.vmem [resolvable:$true] %s913
          %916 = dma.vmem_to_hbm [thread:$0]  %s914, 128, %s12, [#allocation9]
        $region108: #{tpu_custom_call.1} parent=67 // pred_fallthru
          _
        // Predicated region
        $region109: #{tpu_custom_call.1} parent=67 // pred_check
          %p917 = pneg %p309
        $region110: #{tpu_custom_call.1} parent=67 // pred_check_branch
          %919 = sbr.rel (%p917) target = $region112
        $region111: #{tpu_custom_call.1} parent=67 // pred_region
          %920 = dma.done [#allocation9], 128
        $region112: #{tpu_custom_call.1} parent=67 // pred_fallthru
          _
      $region68: #{tpu_custom_call.1} parent=5 // pred_fallthru
        _
      %p921 = scmp.le.s32.totalorder 2, %s29
      // Predicated region
      $region113: #{tpu_custom_call.1} parent=5 // pred_check
        %p922 = pneg %p921
      $region114: #{tpu_custom_call.1} parent=5 // pred_check_branch
        %924 = sbr.rel (%p922) target = $region116
      $region115: #{tpu_custom_call.1} parent=5 // pred_region
        %s925 = ssub.s32 %s29, 2
      $region116: #{tpu_custom_call.1} parent=5 // pred_fallthru
        _
    $region6: #{tpu_custom_call.1} parent=1 // loop_footer
      %s33 = sadd.s32 1, %s29
    $region7: #{tpu_custom_call.1} parent=1 // loop_footer_branch
      %28 = sbr.rel target = $region3
    $region8: #{tpu_custom_call.1} parent=1 // loop_exit
      _
    %926 = vsyncpa [#allocation8], 1
    %s927 = scalar_lea.sflag [#allocation8], 1
    %928 = vsyncpa %s927, 1
    %929 = vsyncpa [#allocation11], 1
    %s930 = scalar_lea.sflag [#allocation11], 1
    %931 = vsyncpa %s930, 1
    %932 = vsyncpa [#allocation14], 1
    %s933 = scalar_lea.sflag [#allocation14], 1
    %934 = vsyncpa %s933, 1
    %935 = vsyncpa [#allocation17], 1
    %936 = vsyncpa [#allocation9], 1
    %s937 = scalar_lea.sflag [#allocation9], 1
    %938 = vsyncpa %s937, 1

</llo_original>
